<compile_context>
chip_gen: v5e
topology: v5e:2x2
jax: 0.10.0
libtpu: 0.0.40
codegen_flags: <defaults>
</compile_context>

<pallas_src>
import functools

import jax
import jax.numpy as jnp
from jax.experimental import pallas as pl
from jax.experimental.pallas import tpu as pltpu

LANE = 128
SUBLANE = 8
MAX_BLOCK_ROWS = 8192    # (8192, 128) f32 = 4 MiB per block; 8 MiB double-buffered
CHUNK_ROWS = 64          # in-kernel chunk: 8 vregs per temporary -> no VMEM spills


def _num_parallel_cores():
    """2 on chips with two TensorCores per JAX device (v4/v5p megacore, v7x);
    1 on single-TC chips (v5e/v6e), where a core axis is just a serial loop."""
    try:
        kind = jax.devices()[0].device_kind.lower().replace(" ", "")
    except Exception:
        return 1
    if "lite" in kind or "v5e" in kind or "v6" in kind:
        return 1
    if any(tag in kind for tag in ("v7", "7x", "v4", "v5p")):
        return 2
    return 1


def _accumulate_rows(x_ref, o_ref, nrows, chunk_rows):
    """o_ref[(8,128)] += sum over the first `nrows` rows of x_ref of
    where(x > 0, x * log(x), 0), folded sublane-tile-wise (pure VPU adds)."""

    def chunk_partial(r0, cr):
        x = x_ref[pl.ds(r0, cr), :].astype(jnp.float32)
        gate = x > 0.0
        safe = jnp.where(gate, x, 1.0)            # log never sees values <= 0
        v = jnp.where(gate, x * jnp.log(safe), 0.0)
        return v.reshape(-1, SUBLANE, LANE).sum(axis=0)   # (8, 128)

    num_chunks = nrows // chunk_rows              # static
    rem = nrows - num_chunks * chunk_rows         # static, multiple of 8

    acc = jnp.zeros((SUBLANE, LANE), jnp.float32)
    if num_chunks > 0:
        def body(t, a):
            r0 = pl.multiple_of(t * chunk_rows, chunk_rows)
            return a + chunk_partial(r0, chunk_rows)
        acc = jax.lax.fori_loop(0, num_chunks, body, acc)
    if rem > 0:
        acc = acc + chunk_partial(num_chunks * chunk_rows, rem)
    o_ref[...] += acc


def _entropy_kernel(x_ref, o_ref, *, blocks_per_core, num_full_blocks,
                    block_rows, valid_rows_last, chunk_rows):
    c = pl.program_id(0)    # core / partial-sum index ("parallel")
    i = pl.program_id(1)    # row-block index within this core ("arbitrary")

    @pl.when(i == 0)
    def _():
        o_ref[...] = jnp.zeros_like(o_ref)

    logical_block = c * blocks_per_core + i

    # Hot path: full blocks need no row mask at all (only the p > 0 gate).
    @pl.when(logical_block < num_full_blocks)
    def _():
        _accumulate_rows(x_ref, o_ref, block_rows, chunk_rows)

    # Ragged tail block (exists only when rows % block_rows != 0): its valid
    # row count is static, so the DMA overhang is simply never read.
    if valid_rows_last > 0:
        @pl.when(logical_block == num_full_blocks)
        def _():
            _accumulate_rows(x_ref, o_ref, valid_rows_last, chunk_rows)
    # logical_block past the last valid block (idle tail steps of the second
    # core) falls through and contributes nothing.


def entropy_loss(predictions, target=None):
    """-mean(where(p > 0, p * log(p), 0)) over all elements.

    `target` is unused (matches the PyTorch module, which ignores it)."""
    del target
    n = predictions.size
    flat = predictions.reshape(-1)

    # Lane/sublane alignment: pad only if numel is not a multiple of 1024.
    # The zero tail contributes nothing thanks to the p > 0 gate; typical
    # dense prediction maps are already aligned and take the no-copy path.
    granule = SUBLANE * LANE
    rem = n % granule
    if rem != 0:
        # TODO(synk): for very large unaligned inputs this jnp.pad is an extra
        # HBM round-trip; an in-kernel flat-index mask would avoid it.
        flat = jnp.pad(flat, (0, granule - rem))
    rows = flat.size // LANE            # multiple of 8
    x2d = flat.reshape(rows, LANE)

    block_rows = rows if rows <= MAX_BLOCK_ROWS else MAX_BLOCK_ROWS
    num_full_blocks = rows // block_rows
    valid_rows_last = rows - num_full_blocks * block_rows   # multiple of 8
    num_blocks = num_full_blocks + (1 if valid_rows_last else 0)

    num_cores = max(1, min(_num_parallel_cores(), num_blocks))
    blocks_per_core = pl.cdiv(num_blocks, num_cores)
    chunk_rows = min(CHUNK_ROWS, block_rows)

    kernel = functools.partial(
        _entropy_kernel,
        blocks_per_core=blocks_per_core,
        num_full_blocks=num_full_blocks,
        block_rows=block_rows,
        valid_rows_last=valid_rows_last,
        chunk_rows=chunk_rows,
    )

    def in_map(c, i):
        # Clamp idle tail steps (second core, odd block counts) to a valid
        # block index; the kernel skips them via the logical_block guards.
        return (jnp.minimum(c * blocks_per_core + i, num_blocks - 1), 0)

    partials = pl.pallas_call(
        kernel,
        out_shape=jax.ShapeDtypeStruct((num_cores * SUBLANE, LANE), jnp.float32),
        grid_spec=pltpu.PrefetchScalarGridSpec(
            num_scalar_prefetch=0,
            grid=(num_cores, blocks_per_core),
            in_specs=[pl.BlockSpec((block_rows, LANE), in_map)],
            out_specs=pl.BlockSpec((SUBLANE, LANE), lambda c, i: (c, 0)),
        ),
        compiler_params=pltpu.CompilerParams(
            dimension_semantics=("parallel", "arbitrary"),
        ),
    )(x2d)

    result = -(jnp.sum(partials) / jnp.float32(n))
    if jnp.issubdtype(predictions.dtype, jnp.floating):
        result = result.astype(predictions.dtype)
    return result


if __name__ == "__main__":
    key = jax.random.PRNGKey(0)
    kp, kt = jax.random.split(key)
    # Small shapes consistent with a dense prediction map (NCHW).
    predictions = jax.nn.softmax(
        jax.random.normal(kp, (2, 4, 16, 16), dtype=jnp.float32), axis=1
    )
    target = jax.random.normal(kt, (2, 4, 16, 16), dtype=jnp.float32)

    loss = entropy_loss(predictions, target)
    jax.block_until_ready(loss)

    # Reference check in plain JAX.
    ref = -jnp.mean(
        jnp.where(predictions > 0, predictions * jnp.log(predictions), 0.0)
    )
    assert jnp.allclose(loss, ref, rtol=1e-5, atol=1e-6), (loss, ref)
    print("KERNEL_OK")
</pallas_src>

<mosaic_0001>
module attributes {stable_mosaic.version = 11 : i64} {
  func.func @_entropy_kernel(%arg0: i32, %arg1: i32, %arg2: memref<16x128xf32, #tpu.memory_space<vmem>>, %arg3: memref<8x128xf32, #tpu.memory_space<vmem>>) attributes {dimension_semantics = [#tpu.dimension_semantics<parallel>, #tpu.dimension_semantics<arbitrary>], iteration_bounds = array<i64: 1, 1>, scalar_prefetch = 0 : i64, scratch_operands = 0 : i64, tpu.core_type = #tpu.core_type<tc>, window_params = [{transform_indices = @transform_0, window_bounds = array<i64: 16, 128>}, {transform_indices = @transform_1, window_bounds = array<i64: 8, 128>}]} {
    %c0_i32 = arith.constant 0 : i32
    %0 = arith.cmpi eq, %arg1, %c0_i32 : i32
    %1 = arith.extui %0 : i1 to i32
    %c0_i32_0 = arith.constant 0 : i32
    %2 = arith.cmpi ne, %1, %c0_i32_0 : i32
    scf.if %2 {
      %cst = arith.constant 0.000000e+00 : f32
      %8 = vector.broadcast %cst : f32 to vector<8x128xf32>
      %c0 = arith.constant 0 : index
      %c0_3 = arith.constant 0 : index
      %9 = vector.load %arg3[%c0, %c0_3] : memref<8x128xf32, #tpu.memory_space<vmem>>, vector<8x128xf32>
      tpu.vector_store %arg3[%c0, %c0_3], %8 {strides = array<i32>} : memref<8x128xf32, #tpu.memory_space<vmem>>, vector<8x128xf32>,
    } else {
    }
    %c1_i32 = arith.constant 1 : i32
    %3 = arith.muli %arg0, %c1_i32 : i32
    %4 = arith.addi %3, %arg1 : i32
    %c1_i32_1 = arith.constant 1 : i32
    %5 = arith.cmpi slt, %4, %c1_i32_1 : i32
    %6 = arith.extui %5 : i1 to i32
    %c0_i32_2 = arith.constant 0 : i32
    %7 = arith.cmpi ne, %6, %c0_i32_2 : i32
    scf.if %7 {
      %cst = arith.constant 0.000000e+00 : f32
      %8 = vector.broadcast %cst : f32 to vector<8x128xf32>
      %c0_i32_3 = arith.constant 0 : i32
      %c16_i32 = arith.constant 16 : i32
      %9 = arith.muli %c0_i32_3, %c16_i32 : i32
      %10 = tpu.assume_multiple %9, 16 : i32
      %11 = arith.index_cast %10 : i32 to index
      %c0 = arith.constant 0 : index
      %12 = vector.load %arg2[%11, %c0] : memref<16x128xf32, #tpu.memory_space<vmem>>, vector<16x128xf32>
      %cst_4 = arith.constant 0.000000e+00 : f32
      %13 = vector.broadcast %cst_4 : f32 to vector<16x128xf32>
      %14 = arith.cmpf ogt, %12, %13 : vector<16x128xf32>
      %cst_5 = arith.constant 1.000000e+00 : f32
      %15 = vector.broadcast %cst_5 : f32 to vector<16x128xf32>
      %16 = arith.select %14, %12, %15 : vector<16x128xi1>, vector<16x128xf32>
      %17 = math.log %16 : vector<16x128xf32>
      %18 = arith.mulf %12, %17 : vector<16x128xf32>
      %cst_6 = arith.constant 0.000000e+00 : f32
      %19 = vector.broadcast %cst_6 : f32 to vector<16x128xf32>
      %20 = arith.select %14, %18, %19 : vector<16x128xi1>, vector<16x128xf32>
      %21 = vector.shape_cast %20 : vector<16x128xf32> to vector<2x8x128xf32>
      %cst_7 = arith.constant dense<0.000000e+00> : vector<8x128xf32>
      %22 = vector.multi_reduction <add>, %21, %cst_7 [0] : vector<2x8x128xf32> to vector<8x128xf32>
      %23 = arith.addf %8, %22 : vector<8x128xf32>
      %c1_i32_8 = arith.constant 1 : i32
      %c0_9 = arith.constant 0 : index
      %c0_10 = arith.constant 0 : index
      %24 = vector.load %arg3[%c0_9, %c0_10] : memref<8x128xf32, #tpu.memory_space<vmem>>, vector<8x128xf32>
      %25 = arith.addf %24, %23 : vector<8x128xf32>
      %c0_11 = arith.constant 0 : index
      %c0_12 = arith.constant 0 : index
      %26 = vector.load %arg3[%c0_11, %c0_12] : memref<8x128xf32, #tpu.memory_space<vmem>>, vector<8x128xf32>
      tpu.vector_store %arg3[%c0_11, %c0_12], %25 {strides = array<i32>} : memref<8x128xf32, #tpu.memory_space<vmem>>, vector<8x128xf32>,
    } else {
    }
    return
  }
  func.func @transform_0(%arg0: i32, %arg1: i32) -> (i32, i32) {
    %c1_i32 = arith.constant 1 : i32
    %0 = arith.muli %arg0, %c1_i32 : i32
    %1 = arith.addi %0, %arg1 : i32
    %c0_i32 = arith.constant 0 : i32
    %2 = arith.minsi %1, %c0_i32 : i32
    %c0_i32_0 = arith.constant 0 : i32
    %c0_i32_1 = arith.constant 0 : i32
    return %2, %c0_i32_0 : i32, i32
  }
  func.func @transform_1(%arg0: i32, %arg1: i32) -> (i32, i32) {
    %c0_i32 = arith.constant 0 : i32
    %c0_i32_0 = arith.constant 0 : i32
    return %arg0, %c0_i32 : i32, i32
  }
}

</mosaic_0001>

<llo_original>
// kernel: tpu_custom_call.1
$region0: #{tpu_custom_call.1}
  #allocation0 [shape = 'u32[]', space=smem, size = 0x4, offset = 0x4, fixed_abs, tag = 'smem constant byte address 0x4 - core index']
  #allocation1 [shape = 'u32[72,128]{1,0:T(1,128)}', space=vmem, size = 0x9000, scoped, tag = 'internal scratch']
  %s0 = inlined_call_operand.hbm [shape: f32[16,128], index: 0, kind: input, shape index: {}]
  %s1 = inlined_call_operand.hbm [shape: f32[8,128], index: 1, kind: output, shape index: {}]
  %s2 = sld [smem:[#allocation0]]
  $region26: #{tpu_custom_call.1} parent=0
    _
  %s4 = ssub.s32 1, %s2
  %s5 = scalar_select 0, %s4, %s2
  $region1: #{tpu_custom_call.1} parent=0
    #allocation2 [shape = 'u8[8192]{0}', space=vmem, size = 0x2000, scoped, tag = 'input window, operand 0, single buffered']
    #allocation3 [shape = 's32[1]{0}', space=sflag, size = 0x4, scoped, tag = 'scoped memory for tpu_custom_call.1']
    #allocation4 [shape = 's32[1]{0}', space=sflag, size = 0x4, scoped, tag = 'scoped memory for tpu_custom_call.1']
    #allocation5 [shape = 'u8[4096]{0}', space=vmem, size = 0x1000, scoped, tag = 'output window, operand 0, single buffered']
    %6 = vsyncpa [#allocation3], 0
    %7 = vsyncpa [#allocation4], 0
    // Predicated region
    $region2: #{tpu_custom_call.1} parent=1 // pred_check
      _
    $region3: #{tpu_custom_call.1} parent=1 // pred_check_branch
      %9 = sbr.rel (0) target = $region5
    $region4: #{tpu_custom_call.1} parent=1 // pred_region
      %s10 = sadd.s32 0, 0
      %p11 = scmp.lt.s32.totalorder %s10, 0
      %s12 = scalar_select %p11, %s10, 0
      %s13 = smul.u32 2, %s12
      %15 = vsyncadd [#allocation3], 0
      %s16 = smul.addr %s13, 8
      %s17 = scalar_lea.hbm %s0, %s16
      %s18 = sshll.u32 %s17, 4
      %s19 = int_to_ptr.hbm [resolvable:$true] %s18
      %s20 = sshll.u32 [#allocation2], 4
      %s21 = int_to_ptr.vmem [resolvable:$true] %s20
      %26 = dma.hbm_to_vmem [thread:$0]  %s19, 256, %s21, [#allocation3], 128, 128, 8
    $region5: #{tpu_custom_call.1} parent=1 // pred_fallthru
      _
    // Predicated region
    $region6: #{tpu_custom_call.1} parent=1 // pred_check
      _
    $region7: #{tpu_custom_call.1} parent=1 // pred_check_branch
      %28 = sbr.rel (0) target = $region9
    $region8: #{tpu_custom_call.1} parent=1 // pred_region
      %30 = dma.done [#allocation3], 256
    $region9: #{tpu_custom_call.1} parent=1 // pred_fallthru
      _
    %s31 = sadd.s32 0, 0
    %p32 = scmp.lt.s32.totalorder %s31, 0
    %s33 = scalar_select %p32, %s31, 0
    %s34 = smul.u32 2, %s33
    %p35 = scmp.eq.s32.totalorder 0, 0
    // Predicated region
    $region10: #{tpu_custom_call.1} parent=1 // pred_check
      %p36 = pneg %p35
    $region11: #{tpu_custom_call.1} parent=1 // pred_check_branch
      %38 = sbr.rel (%p36) target = $region13
    $region12: #{tpu_custom_call.1} parent=1 // pred_region
      %39 = vst [vmem:[#allocation5] sm:$0xff] 0.0
    $region13: #{tpu_custom_call.1} parent=1 // pred_fallthru
      _
    %s40 = sadd.s32 0, 0
    %p41 = scmp.lt.s32.totalorder %s40, 1
    // Predicated region
    $region14: #{tpu_custom_call.1} parent=1 // pred_check
      %p42 = pneg %p41
    $region15: #{tpu_custom_call.1} parent=1 // pred_check_branch
      %44 = sbr.rel (%p42) target = $region17
    $region16: #{tpu_custom_call.1} parent=1 // pred_region
      %v45 = vld [vmem:[#allocation2] sm:$0xff]
      %v46 = vld [vmem:[#allocation2 + $0x8] sm:$0xff]
      %vm47 = vcmp.gt.f32.partialorder %v45, 0.0
      %vm48 = vcmp.gt.f32.partialorder %v46, 0.0
      %v49 = vsel %vm47, %v45, 1.0
      %v50 = vsel %vm48, %v46, 1.0
      %v51 = vlog2.pop %v49
      %v52 = vmul.f32 %v51, 0.6931472
      %v53 = vlog2.pop %v50
      %v54 = vmul.f32 %v53, 0.6931472
      %v55 = vmul.f32 %v45, %v52
      %v56 = vmul.f32 %v46, %v54
      %v57 = vsel %vm47, %v55, 0.0
      %v58 = vsel %vm48, %v56, 0.0
      %v59 = vadd.f32 %v57, %v58
      %v60 = vadd.f32 %v59, 0.0
      %v61 = vld [vmem:[#allocation5] sm:$0xff]
      %v62 = vadd.f32 %v61, %v60
      %63 = vst [vmem:[#allocation5] sm:$0xff] %v62
    $region17: #{tpu_custom_call.1} parent=1 // pred_fallthru
      _
    // Predicated region
    $region18: #{tpu_custom_call.1} parent=1 // pred_check
      _
    $region19: #{tpu_custom_call.1} parent=1 // pred_check_branch
      %65 = sbr.rel (0) target = $region21
    $region20: #{tpu_custom_call.1} parent=1 // pred_region
      %67 = vsyncadd [#allocation4], 0
      %s69 = sshll.u32 [#allocation5], 4
      %s70 = int_to_ptr.vmem [resolvable:$true] %s69
      %s71 = sshll.u32 %s1, 4
      %s72 = int_to_ptr.hbm [resolvable:$true] %s71
      %74 = dma.vmem_to_hbm [thread:$0]  %s70, 128, %s72, [#allocation4]
    $region21: #{tpu_custom_call.1} parent=1 // pred_fallthru
      _
    // Predicated region
    $region22: #{tpu_custom_call.1} parent=1 // pred_check
      _
    $region23: #{tpu_custom_call.1} parent=1 // pred_check_branch
      %76 = sbr.rel (0) target = $region25
    $region24: #{tpu_custom_call.1} parent=1 // pred_region
      %78 = dma.done [#allocation4], 128
    $region25: #{tpu_custom_call.1} parent=1 // pred_fallthru
      _
    %79 = vsyncpa [#allocation3], 1
    %80 = vsyncpa [#allocation4], 1

</llo_original>
